<compile_context>
chip_gen: v5e
topology: v5e:2x2
jax: 0.10.0
libtpu: 0.0.40
codegen_flags: <defaults>
</compile_context>

<pallas_src>
import functools

import jax
import jax.numpy as jnp
from jax.experimental import pallas as pl
from jax.experimental.pallas import tpu as pltpu


def _round_up(v: int, m: int) -> int:
    return (v + m - 1) // m * m


# ---------------------------------------------------------------------------
# Fused path: whole 2-layer forward in one kernel, single grid step.
# ---------------------------------------------------------------------------
def _fused_encoder_kernel(a_ref, x_ref, w1_ref, w2_ref, o_ref):
    a = a_ref[...]                                                   # (N, N) bf16
    # layer 1: support1 = X @ W1 ; h1 = relu(A @ support1)
    s1 = jnp.dot(x_ref[...], w1_ref[...], preferred_element_type=jnp.float32)
    h1 = jnp.maximum(
        jnp.dot(a, s1.astype(a.dtype), preferred_element_type=jnp.float32), 0.0)
    # TODO(synk): training-mode dropout on h1 would go here (pltpu.prng_* mask);
    # eval mode => identity.
    # layer 2: support2 = h1 @ W2 ; out = A @ support2
    s2 = jnp.dot(h1.astype(w2_ref.dtype), w2_ref[...],
                 preferred_element_type=jnp.float32)
    o_ref[...] = jnp.dot(a, s2.astype(a.dtype),
                         preferred_element_type=jnp.float32).astype(o_ref.dtype)


def _fused_encoder(adj, x, w1, w2):
    n, f = x.shape
    h1 = w1.shape[1]
    h2 = w2.shape[1]
    flops = 2 * (n * f * h1 + n * n * h1 + n * h1 * h2 + n * n * h2)
    bytes_accessed = 2 * (n * n + n * f + f * h1 + h1 * h2) + 4 * n * h2
    return pl.pallas_call(
        _fused_encoder_kernel,
        out_shape=jax.ShapeDtypeStruct((n, h2), jnp.float32),
        grid=(1,),
        in_specs=[
            pl.BlockSpec((n, n), lambda i: (0, 0)),
            pl.BlockSpec((n, f), lambda i: (0, 0)),
            pl.BlockSpec((f, h1), lambda i: (0, 0)),
            pl.BlockSpec((h1, h2), lambda i: (0, 0)),
        ],
        out_specs=pl.BlockSpec((n, h2), lambda i: (0, 0)),
        compiler_params=pltpu.CompilerParams(dimension_semantics=("arbitrary",)),
        cost_estimate=pl.CostEstimate(
            flops=flops, transcendentals=0, bytes_accessed=bytes_accessed),
    )(adj, x, w1, w2)


# ---------------------------------------------------------------------------
# Tiled path (larger graphs): hoisted support matmul + accumulated propagation.
# ---------------------------------------------------------------------------
def _rowmm_kernel(x_ref, w_ref, o_ref):
    o_ref[...] = jnp.dot(x_ref[...], w_ref[...],
                         preferred_element_type=jnp.float32).astype(o_ref.dtype)


def _row_matmul(x, w, *, tile_m, out_dtype):
    """support = x @ w, tiled over rows of x (hoisted out of the propagation grid)."""
    m, k = x.shape
    n = w.shape[1]
    return pl.pallas_call(
        _rowmm_kernel,
        out_shape=jax.ShapeDtypeStruct((m, n), out_dtype),
        grid=(m // tile_m,),
        in_specs=[
            pl.BlockSpec((tile_m, k), lambda i: (i, 0)),
            pl.BlockSpec((k, n), lambda i: (0, 0)),
        ],
        out_specs=pl.BlockSpec((tile_m, n), lambda i: (i, 0)),
        compiler_params=pltpu.CompilerParams(dimension_semantics=("parallel",)),
    )(x, w)


def _propagate_kernel(a_ref, s_ref, o_ref, acc_ref, *, apply_relu):
    @pl.when(pl.program_id(1) == 0)
    def _():
        acc_ref[...] = jnp.zeros_like(acc_ref)

    acc_ref[...] += jnp.dot(a_ref[...], s_ref[...],
                            preferred_element_type=jnp.float32)

    @pl.when(pl.program_id(1) == pl.num_programs(1) - 1)
    def _():
        out = acc_ref[...]
        if apply_relu:
            out = jnp.maximum(out, 0.0)
        o_ref[...] = out.astype(o_ref.dtype)


def _propagate(adj, support, *, apply_relu, tile_n, tile_k, out_dtype):
    """out = [relu](adj @ support), tiled over node rows and the contraction axis."""
    n = adj.shape[0]
    h = support.shape[1]
    return pl.pallas_call(
        functools.partial(_propagate_kernel, apply_relu=apply_relu),
        out_shape=jax.ShapeDtypeStruct((n, h), out_dtype),
        grid=(n // tile_n, n // tile_k),
        in_specs=[
            pl.BlockSpec((tile_n, tile_k), lambda i, k: (i, k)),
            pl.BlockSpec((tile_k, h), lambda i, k: (k, 0)),
        ],
        out_specs=pl.BlockSpec((tile_n, h), lambda i, k: (i, 0)),
        scratch_shapes=[pltpu.VMEM((tile_n, h), jnp.float32)],
        compiler_params=pltpu.CompilerParams(
            dimension_semantics=("parallel", "arbitrary")),
    )(adj, support)


# ---------------------------------------------------------------------------
# Encoder forward
# ---------------------------------------------------------------------------
def gcn_encoder_forward(features, adj, w1, w2,
                        *, fuse_vmem_budget_bytes=8 * 1024 * 1024):
    """GCNEncoder.forward (eval mode: dropout = identity)."""
    n, f = features.shape
    h1 = w1.shape[1]
    h2 = w2.shape[1]

    # bf16 MXU operands; all accumulation stays in f32 inside the kernels.
    a_bf = adj.astype(jnp.bfloat16)
    x_bf = features.astype(jnp.bfloat16)
    w1_bf = w1.astype(jnp.bfloat16)
    w2_bf = w2.astype(jnp.bfloat16)

    # Rough VMEM need of the fused single-step kernel (2x for pipelining buffers
    # on the bf16 operands + f32 temporaries + f32 output).
    fused_bytes = (4 * (n * n + n * f + f * h1 + h1 * h2)      # bf16 ins, double-buf
                   + 4 * n * (f + 2 * h1 + 2 * h2)             # f32 temporaries
                   + 4 * n * h2)                               # f32 output
    if fused_bytes <= fuse_vmem_budget_bytes:
        return _fused_encoder(a_bf, x_bf, w1_bf, w2_bf)

    # ---- tiled path for large graphs ----
    TILE = 128
    n_pad = _round_up(n, TILE)
    h1_pad = _round_up(h1, 128)   # lane-dense hidden / output stores
    h2_pad = _round_up(h2, 128)

    a_p = jnp.pad(a_bf, ((0, n_pad - n), (0, n_pad - n)))
    x_p = jnp.pad(x_bf, ((0, n_pad - n), (0, 0)))
    w1_p = jnp.pad(w1_bf, ((0, 0), (0, h1_pad - h1)))
    w2_p = jnp.pad(w2_bf, ((0, h1_pad - h1), (0, h2_pad - h2)))

    # layer 1: hoisted support, then tiled propagate + relu
    s1 = _row_matmul(x_p, w1_p, tile_m=TILE, out_dtype=jnp.bfloat16)
    h1_act = _propagate(a_p, s1, apply_relu=True, tile_n=TILE, tile_k=TILE,
                        out_dtype=jnp.bfloat16)
    # TODO(synk): training-mode dropout on h1_act (pltpu.prng_* mask); eval => identity.

    # layer 2: hoisted support, then tiled propagate (no relu)
    s2 = _row_matmul(h1_act, w2_p, tile_m=TILE, out_dtype=jnp.bfloat16)
    out = _propagate(a_p, s2, apply_relu=False, tile_n=TILE, tile_k=TILE,
                     out_dtype=jnp.float32)
    return out[:n, :h2]


# ---------------------------------------------------------------------------
# Reference + demo
# ---------------------------------------------------------------------------
def _ref_forward(features, adj, w1, w2):
    h1 = jnp.maximum(adj @ (features @ w1), 0.0)
    return adj @ (h1 @ w2)


def _glorot(key, shape):
    fan_in, fan_out = shape
    limit = jnp.sqrt(6.0 / (fan_in + fan_out))
    return jax.random.uniform(key, shape, jnp.float32, -limit, limit)


def _make_adj(key, n):
    raw = (jax.random.uniform(key, (n, n)) < 0.1).astype(jnp.float32)
    a = jnp.minimum(raw + raw.T + jnp.eye(n, dtype=jnp.float32), 1.0)
    return a / jnp.sum(a, axis=1, keepdims=True)


if __name__ == "__main__":
    # Module-consistent small shapes: N nodes = 64, num_features = 32,
    # hidden1 = 32, hidden2 = 16.
    N, NUM_FEATURES, HIDDEN1, HIDDEN2 = 64, 32, 32, 16

    key = jax.random.PRNGKey(0)
    k_feat, k_adj, k_w1, k_w2 = jax.random.split(key, 4)

    features = jax.random.normal(k_feat, (N, NUM_FEATURES), jnp.float32)
    adj = _make_adj(k_adj, N)           # dense, symmetric, row-normalized
    w1 = _glorot(k_w1, (NUM_FEATURES, HIDDEN1))
    w2 = _glorot(k_w2, (HIDDEN1, HIDDEN2))

    # Fused single-kernel path (used at the module's toy shapes).
    emb = jax.block_until_ready(gcn_encoder_forward(features, adj, w1, w2))
    ref = _ref_forward(features, adj, w1, w2)
    assert emb.shape == (N, HIDDEN2)
    # tolerance accounts for intentional bf16 quantization of MXU operands
    assert jnp.allclose(emb, ref, atol=5e-2, rtol=5e-2), \
        float(jnp.max(jnp.abs(emb - ref)))

    # Tiled path (hoisted X@W + accumulated propagation), forced via a 0-byte fuse
    # budget and exercised at a non-multiple-of-128 node count to test padding.
    N2 = 200
    k_f2, k_a2 = jax.random.split(jax.random.PRNGKey(1))
    feat2 = jax.random.normal(k_f2, (N2, NUM_FEATURES), jnp.float32)
    adj2 = _make_adj(k_a2, N2)
    emb2 = jax.block_until_ready(
        gcn_encoder_forward(feat2, adj2, w1, w2, fuse_vmem_budget_bytes=0))
    ref2 = _ref_forward(feat2, adj2, w1, w2)
    assert emb2.shape == (N2, HIDDEN2)
    assert jnp.allclose(emb2, ref2, atol=5e-2, rtol=5e-2), \
        float(jnp.max(jnp.abs(emb2 - ref2)))

    print("KERNEL_OK")
</pallas_src>

<mosaic_0001>
module attributes {stable_mosaic.version = 11 : i64} {
  func.func @_fused_encoder_kernel(%arg0: i32, %arg1: memref<64x64xbf16, #tpu.memory_space<vmem>>, %arg2: memref<64x32xbf16, #tpu.memory_space<vmem>>, %arg3: memref<32x32xbf16, #tpu.memory_space<vmem>>, %arg4: memref<32x16xbf16, #tpu.memory_space<vmem>>, %arg5: memref<64x16xf32, #tpu.memory_space<vmem>>) attributes {dimension_semantics = [#tpu.dimension_semantics<arbitrary>], iteration_bounds = array<i64: 1>, scalar_prefetch = 0 : i64, scratch_operands = 0 : i64, tpu.core_type = #tpu.core_type<tc>, window_params = [{pipeline_mode = #tpu.pipeline_mode<synchronous>, transform_indices = @transform_0, window_bounds = array<i64: 64, 64>}, {pipeline_mode = #tpu.pipeline_mode<synchronous>, transform_indices = @transform_1, window_bounds = array<i64: 64, 32>}, {pipeline_mode = #tpu.pipeline_mode<synchronous>, transform_indices = @transform_2, window_bounds = array<i64: 32, 32>}, {pipeline_mode = #tpu.pipeline_mode<synchronous>, transform_indices = @transform_3, window_bounds = array<i64: 32, 16>}, {pipeline_mode = #tpu.pipeline_mode<synchronous>, transform_indices = @transform_4, window_bounds = array<i64: 64, 16>}]} {
    %c0 = arith.constant 0 : index
    %c0_0 = arith.constant 0 : index
    %0 = vector.load %arg1[%c0, %c0_0] : memref<64x64xbf16, #tpu.memory_space<vmem>>, vector<64x64xbf16>
    %c0_1 = arith.constant 0 : index
    %c0_2 = arith.constant 0 : index
    %1 = vector.load %arg2[%c0_1, %c0_2] : memref<64x32xbf16, #tpu.memory_space<vmem>>, vector<64x32xbf16>
    %c0_3 = arith.constant 0 : index
    %c0_4 = arith.constant 0 : index
    %2 = vector.load %arg3[%c0_3, %c0_4] : memref<32x32xbf16, #tpu.memory_space<vmem>>, vector<32x32xbf16>
    %cst = arith.constant dense<0.000000e+00> : vector<64x32xf32>
    %3 = tpu.matmul %1, %2, %cst {dimension_numbers = #tpu.dot_dimension_numbers<[1], [0], [0], [1], [0, 0, 1, 1], [], []>} : vector<64x32xbf16>, vector<32x32xbf16>, vector<64x32xf32> -> vector<64x32xf32>
    %4 = arith.truncf %3 : vector<64x32xf32> to vector<64x32xbf16>
    %cst_5 = arith.constant dense<0.000000e+00> : vector<64x32xf32>
    %5 = tpu.matmul %0, %4, %cst_5 {dimension_numbers = #tpu.dot_dimension_numbers<[1], [0], [0], [1], [0, 0, 1, 1], [], []>} : vector<64x64xbf16>, vector<64x32xbf16>, vector<64x32xf32> -> vector<64x32xf32>
    %cst_6 = arith.constant 0.000000e+00 : f32
    %6 = vector.broadcast %cst_6 : f32 to vector<64x32xf32>
    %7 = arith.maximumf %5, %6 : vector<64x32xf32>
    %8 = arith.truncf %7 : vector<64x32xf32> to vector<64x32xbf16>
    %c0_7 = arith.constant 0 : index
    %c0_8 = arith.constant 0 : index
    %9 = vector.load %arg4[%c0_7, %c0_8] : memref<32x16xbf16, #tpu.memory_space<vmem>>, vector<32x16xbf16>
    %cst_9 = arith.constant dense<0.000000e+00> : vector<64x16xf32>
    %10 = tpu.matmul %8, %9, %cst_9 {dimension_numbers = #tpu.dot_dimension_numbers<[1], [0], [0], [1], [0, 0, 1, 1], [], []>} : vector<64x32xbf16>, vector<32x16xbf16>, vector<64x16xf32> -> vector<64x16xf32>
    %11 = arith.truncf %10 : vector<64x16xf32> to vector<64x16xbf16>
    %cst_10 = arith.constant dense<0.000000e+00> : vector<64x16xf32>
    %12 = tpu.matmul %0, %11, %cst_10 {dimension_numbers = #tpu.dot_dimension_numbers<[1], [0], [0], [1], [0, 0, 1, 1], [], []>} : vector<64x64xbf16>, vector<64x16xbf16>, vector<64x16xf32> -> vector<64x16xf32>
    %c0_11 = arith.constant 0 : index
    %c0_12 = arith.constant 0 : index
    %13 = vector.load %arg5[%c0_11, %c0_12] : memref<64x16xf32, #tpu.memory_space<vmem>>, vector<64x16xf32>
    tpu.vector_store %arg5[%c0_11, %c0_12], %12 {strides = array<i32>} : memref<64x16xf32, #tpu.memory_space<vmem>>, vector<64x16xf32>,
    return
  }
  func.func @transform_0(%arg0: i32) -> (i32, i32) {
    %c0_i32 = arith.constant 0 : i32
    %c0_i32_0 = arith.constant 0 : i32
    %c0_i32_1 = arith.constant 0 : i32
    return %c0_i32, %c0_i32_0 : i32, i32
  }
  func.func @transform_1(%arg0: i32) -> (i32, i32) {
    %c0_i32 = arith.constant 0 : i32
    %c0_i32_0 = arith.constant 0 : i32
    %c0_i32_1 = arith.constant 0 : i32
    return %c0_i32, %c0_i32_0 : i32, i32
  }
  func.func @transform_2(%arg0: i32) -> (i32, i32) {
    %c0_i32 = arith.constant 0 : i32
    %c0_i32_0 = arith.constant 0 : i32
    %c0_i32_1 = arith.constant 0 : i32
    return %c0_i32, %c0_i32_0 : i32, i32
  }
  func.func @transform_3(%arg0: i32) -> (i32, i32) {
    %c0_i32 = arith.constant 0 : i32
    %c0_i32_0 = arith.constant 0 : i32
    %c0_i32_1 = arith.constant 0 : i32
    return %c0_i32, %c0_i32_0 : i32, i32
  }
  func.func @transform_4(%arg0: i32) -> (i32, i32) {
    %c0_i32 = arith.constant 0 : i32
    %c0_i32_0 = arith.constant 0 : i32
    %c0_i32_1 = arith.constant 0 : i32
    return %c0_i32, %c0_i32_0 : i32, i32
  }
}

</mosaic_0001>

<llo_original>
// kernel: tpu_custom_call.1
$region0: #{tpu_custom_call.1}
  #allocation0 [shape = 'u32[]', space=smem, size = 0x4, offset = 0x4, fixed_abs, tag = 'smem constant byte address 0x4 - core index']
  #allocation1 [shape = 'u32[72,128]{1,0:T(1,128)}', space=vmem, size = 0x9000, scoped, tag = 'internal scratch']
  %s0 = inlined_call_operand.vmem [shape: bf16[64,64], index: 0, kind: input, shape index: {}]
  %s1 = inlined_call_operand.vmem [shape: bf16[64,32], index: 1, kind: input, shape index: {}]
  %s2 = inlined_call_operand.vmem [shape: bf16[32,32], index: 2, kind: input, shape index: {}]
  %s3 = inlined_call_operand.vmem [shape: bf16[32,16], index: 3, kind: input, shape index: {}]
  %s4 = inlined_call_operand.vmem [shape: f32[64,16], index: 4, kind: output, shape index: {}]
  %s5 = sld [smem:[#allocation0]]
  $region26: #{tpu_custom_call.1} parent=0
    _
  %s7 = ssub.s32 1, %s5
  %s8 = scalar_select 0, %s7, %s5
  // Predicated region
  $region2: #{tpu_custom_call.1} parent=0 // pred_check
    _
  $region3: #{tpu_custom_call.1} parent=0 // pred_check_branch
    %10 = sbr.rel (0) target = $region5
  $region4: #{tpu_custom_call.1} parent=0 // pred_region
    _
  $region5: #{tpu_custom_call.1} parent=0 // pred_fallthru
    _
  // Predicated region
  $region6: #{tpu_custom_call.1} parent=0 // pred_check
    _
  $region7: #{tpu_custom_call.1} parent=0 // pred_check_branch
    %12 = sbr.rel (0) target = $region9
  $region8: #{tpu_custom_call.1} parent=0 // pred_region
    _
  $region9: #{tpu_custom_call.1} parent=0 // pred_fallthru
    _
  // Predicated region
  $region10: #{tpu_custom_call.1} parent=0 // pred_check
    _
  $region11: #{tpu_custom_call.1} parent=0 // pred_check_branch
    %14 = sbr.rel (0) target = $region13
  $region12: #{tpu_custom_call.1} parent=0 // pred_region
    _
  $region13: #{tpu_custom_call.1} parent=0 // pred_fallthru
    _
  // Predicated region
  $region14: #{tpu_custom_call.1} parent=0 // pred_check
    _
  $region15: #{tpu_custom_call.1} parent=0 // pred_check_branch
    %16 = sbr.rel (0) target = $region17
  $region16: #{tpu_custom_call.1} parent=0 // pred_region
    _
  $region17: #{tpu_custom_call.1} parent=0 // pred_fallthru
    _
  %v18 = vld [vmem:[%s0] sm:$0xf]
  %v19 = vld [vmem:[%s0 + $0x4] sm:$0xf]
  %v20 = vld [vmem:[%s0 + $0x8] sm:$0xf]
  %v21 = vld [vmem:[%s0 + $0xc] sm:$0xf]
  %v22 = vld [vmem:[%s0 + $0x10] sm:$0xf]
  %v23 = vld [vmem:[%s0 + $0x14] sm:$0xf]
  %v24 = vld [vmem:[%s0 + $0x18] sm:$0xf]
  %v25 = vld [vmem:[%s0 + $0x1c] sm:$0xf]
  %v26 = vld [vmem:[%s1] sm:$0xf]
  %v27 = vld [vmem:[%s1 + $0x4] sm:$0xf]
  %v28 = vld [vmem:[%s1 + $0x8] sm:$0xf]
  %v29 = vld [vmem:[%s1 + $0xc] sm:$0xf]
  %v30 = vld [vmem:[%s1 + $0x10] sm:$0xf]
  %v31 = vld [vmem:[%s1 + $0x14] sm:$0xf]
  %v32 = vld [vmem:[%s1 + $0x18] sm:$0xf]
  %v33 = vld [vmem:[%s1 + $0x1c] sm:$0xf]
  %v34 = vld [vmem:[%s2] sm:$0xf]
  %v35 = vld [vmem:[%s2 + $0x4] sm:$0xf]
  %v36 = vld [vmem:[%s2 + $0x8] sm:$0xf]
  %v37 = vld [vmem:[%s2 + $0xc] sm:$0xf]
  %v46 = vunpack.c.l.b16 %v26
  %v47 = vunpack.c.l.b16 %v27
  %v48 = vunpack.c.l.b16 %v28
  %v49 = vunpack.c.l.b16 %v29
  %v50 = vunpack.c.l.b16 %v30
  %v51 = vunpack.c.l.b16 %v31
  %v52 = vunpack.c.l.b16 %v32
  %v53 = vunpack.c.l.b16 %v33
  %v54 = vpack.c.b16 %v47, %v46
  %v55 = vpack.c.b16 %v49, %v48
  %v56 = vpack.c.b16 %v51, %v50
  %v57 = vpack.c.b16 %v53, %v52
  %v62 = vunpack.c.l.b16 %v34
  %v63 = vunpack.c.l.b16 %v35
  %v64 = vunpack.c.l.b16 %v36
  %v65 = vunpack.c.l.b16 %v37
  %v66 = vpack.c.b16 %v63, %v62
  %v67 = vpack.c.b16 %v65, %v64
  %vm70 = vcmask 261120
  %v72 = vsel %vm70, %v54, 0
  %v75 = vsel %vm70, %v55, 0
  %v78 = vsel %vm70, %v56, 0
  %v81 = vsel %vm70, %v57, 0
  %83 = vmatpush.bf16.msra.mxu0 0
  %84 = vmatpush.bf16.msra.mxu0 0
  %85 = vmatpush.bf16.msra.mxu0 0
  %86 = vmatpush.bf16.msra.mxu0 0
  %87 = vmatpush.bf16.msra.mxu0 0
  %88 = vmatpush.bf16.msra.mxu0 0
  %89 = vmatpush.bf16.msra.mxu0 %v67
  %90 = vmatpush.bf16.msra.mxu0 %v66
  %91 = vmatmul.bf16.gmra.mxu0 %v72
  %v92 = vpop.f32.mrf.mxu0
  %v93 = vadd.f32 0.0, %v92
  %v94 = vpop.f32.mrf.mxu0
  %v95 = vadd.f32 0.0, %v94
  %96 = vmatmul.bf16.gmra.mxu0 %v75
  %v97 = vpop.f32.mrf.mxu0
  %v98 = vadd.f32 0.0, %v97
  %v99 = vpop.f32.mrf.mxu0
  %v100 = vadd.f32 0.0, %v99
  %101 = vmatmul.bf16.gmra.mxu0 %v78
  %v102 = vpop.f32.mrf.mxu0
  %v103 = vadd.f32 0.0, %v102
  %v104 = vpop.f32.mrf.mxu0
  %v105 = vadd.f32 0.0, %v104
  %106 = vmatmul.bf16.gmra.mxu0 %v81
  %v107 = vpop.f32.mrf.mxu0
  %v108 = vadd.f32 0.0, %v107
  %v109 = vpop.f32.mrf.mxu0
  %v110 = vadd.f32 0.0, %v109
  %111 = vdwg.mxu0
  %v112 = vpack.c.bf16 %v95, %v93
  %v113 = vpack.c.bf16 %v100, %v98
  %v114 = vpack.c.bf16 %v105, %v103
  %v115 = vpack.c.bf16 %v110, %v108
  %v124 = vunpack.c.l.b16 %v18
  %v125 = vunpack.c.l.b16 %v19
  %v126 = vunpack.c.l.b16 %v20
  %v127 = vunpack.c.l.b16 %v21
  %v128 = vunpack.c.l.b16 %v22
  %v129 = vunpack.c.l.b16 %v23
  %v130 = vunpack.c.l.b16 %v24
  %v131 = vunpack.c.l.b16 %v25
  %v132 = vpack.c.b16 %v125, %v124
  %v133 = vpack.c.b16 %v127, %v126
  %v134 = vpack.c.b16 %v129, %v128
  %v135 = vpack.c.b16 %v131, %v130
  %vm136 = vcmask 523264
  %v138 = vsel %vm136, %v132, 0
  %v141 = vsel %vm136, %v133, 0
  %v144 = vsel %vm136, %v134, 0
  %v147 = vsel %vm136, %v135, 0
  %149 = vmatpush.bf16.msra.mxu0 0
  %150 = vmatpush.bf16.msra.mxu0 0
  %151 = vmatpush.bf16.msra.mxu0 0
  %152 = vmatpush.bf16.msra.mxu0 0
  %153 = vmatpush.bf16.msra.mxu0 %v115
  %154 = vmatpush.bf16.msra.mxu0 %v114
  %155 = vmatpush.bf16.msra.mxu0 %v113
  %156 = vmatpush.bf16.msra.mxu0 %v112
  %157 = vmatmul.bf16.gmra.mxu0 %v138
  %v158 = vpop.f32.mrf.mxu0
  %v159 = vadd.f32 0.0, %v158
  %v160 = vpop.f32.mrf.mxu0
  %v161 = vadd.f32 0.0, %v160
  %162 = vmatmul.bf16.gmra.mxu0 %v141
  %v163 = vpop.f32.mrf.mxu0
  %v164 = vadd.f32 0.0, %v163
  %v165 = vpop.f32.mrf.mxu0
  %v166 = vadd.f32 0.0, %v165
  %167 = vmatmul.bf16.gmra.mxu0 %v144
  %v168 = vpop.f32.mrf.mxu0
  %v169 = vadd.f32 0.0, %v168
  %v170 = vpop.f32.mrf.mxu0
  %v171 = vadd.f32 0.0, %v170
  %172 = vmatmul.bf16.gmra.mxu0 %v147
  %v173 = vpop.f32.mrf.mxu0
  %v174 = vadd.f32 0.0, %v173
  %v175 = vpop.f32.mrf.mxu0
  %v176 = vadd.f32 0.0, %v175
  %177 = vdwg.mxu0
  %v178 = vmax.f32 %v159, 0.0
  %v179 = vmax.f32 %v161, 0.0
  %v180 = vmax.f32 %v164, 0.0
  %v181 = vmax.f32 %v166, 0.0
  %v182 = vmax.f32 %v169, 0.0
  %v183 = vmax.f32 %v171, 0.0
  %v184 = vmax.f32 %v174, 0.0
  %v185 = vmax.f32 %v176, 0.0
  %v186 = vpack.c.bf16 %v179, %v178
  %v187 = vpack.c.bf16 %v181, %v180
  %v188 = vpack.c.bf16 %v183, %v182
  %v189 = vpack.c.bf16 %v185, %v184
  %v190 = vld [vmem:[%s3] sm:$0xf]
  %v191 = vld [vmem:[%s3 + $0x4] sm:$0xf]
  %v192 = vld [vmem:[%s3 + $0x8] sm:$0xf]
  %v193 = vld [vmem:[%s3 + $0xc] sm:$0xf]
  %v198 = vunpack.c.l.b16 %v190
  %v199 = vunpack.c.l.b16 %v191
  %v200 = vunpack.c.l.b16 %v192
  %v201 = vunpack.c.l.b16 %v193
  %v202 = vpack.c.b16 %v199, %v198
  %v203 = vpack.c.b16 %v201, %v200
  %v207 = vsel %vm70, %v186, 0
  %v210 = vsel %vm70, %v187, 0
  %v213 = vsel %vm70, %v188, 0
  %v216 = vsel %vm70, %v189, 0
  %218 = vmatpush.bf16.msra.mxu0 0
  %219 = vmatpush.bf16.msra.mxu0 0
  %220 = vmatpush.bf16.msra.mxu0 0
  %221 = vmatpush.bf16.msra.mxu0 0
  %222 = vmatpush.bf16.msra.mxu0 0
  %223 = vmatpush.bf16.msra.mxu0 0
  %224 = vmatpush.bf16.msra.mxu0 %v203
  %225 = vmatpush.bf16.msra.mxu0 %v202
  %226 = vmatmul.bf16.gmra.mxu0 %v207
  %v227 = vpop.f32.mrf.mxu0
  %v228 = vadd.f32 0.0, %v227
  %v229 = vpop.f32.mrf.mxu0
  %v230 = vadd.f32 0.0, %v229
  %231 = vmatmul.bf16.gmra.mxu0 %v210
  %v232 = vpop.f32.mrf.mxu0
  %v233 = vadd.f32 0.0, %v232
  %v234 = vpop.f32.mrf.mxu0
  %v235 = vadd.f32 0.0, %v234
  %236 = vmatmul.bf16.gmra.mxu0 %v213
  %v237 = vpop.f32.mrf.mxu0
  %v238 = vadd.f32 0.0, %v237
  %v239 = vpop.f32.mrf.mxu0
  %v240 = vadd.f32 0.0, %v239
  %241 = vmatmul.bf16.gmra.mxu0 %v216
  %v242 = vpop.f32.mrf.mxu0
  %v243 = vadd.f32 0.0, %v242
  %v244 = vpop.f32.mrf.mxu0
  %v245 = vadd.f32 0.0, %v244
  %246 = vdwg.mxu0
  %v247 = vpack.c.bf16 %v230, %v228
  %v248 = vpack.c.bf16 %v235, %v233
  %v249 = vpack.c.bf16 %v240, %v238
  %v250 = vpack.c.bf16 %v245, %v243
  %251 = vmatpush.bf16.msra.mxu0 0
  %252 = vmatpush.bf16.msra.mxu0 0
  %253 = vmatpush.bf16.msra.mxu0 0
  %254 = vmatpush.bf16.msra.mxu0 0
  %255 = vmatpush.bf16.msra.mxu0 %v250
  %256 = vmatpush.bf16.msra.mxu0 %v249
  %257 = vmatpush.bf16.msra.mxu0 %v248
  %258 = vmatpush.bf16.msra.mxu0 %v247
  %259 = vmatmul.bf16.gmra.mxu0 %v138
  %v260 = vpop.f32.mrf.mxu0
  %v261 = vadd.f32 0.0, %v260
  %v262 = vpop.f32.mrf.mxu0
  %v263 = vadd.f32 0.0, %v262
  %264 = vmatmul.bf16.gmra.mxu0 %v141
  %v265 = vpop.f32.mrf.mxu0
  %v266 = vadd.f32 0.0, %v265
  %v267 = vpop.f32.mrf.mxu0
  %v268 = vadd.f32 0.0, %v267
  %269 = vmatmul.bf16.gmra.mxu0 %v144
  %v270 = vpop.f32.mrf.mxu0
  %v271 = vadd.f32 0.0, %v270
  %v272 = vpop.f32.mrf.mxu0
  %v273 = vadd.f32 0.0, %v272
  %274 = vmatmul.bf16.gmra.mxu0 %v147
  %v275 = vpop.f32.mrf.mxu0
  %v276 = vadd.f32 0.0, %v275
  %v277 = vpop.f32.mrf.mxu0
  %v278 = vadd.f32 0.0, %v277
  %279 = vdwg.mxu0
  %vm280 = vcmask 130048
  %281 = vst.msk [vmem:[%s4] sm:$0xff] %vm280, %v261
  %282 = vst.msk [vmem:[%s4 + $0x8] sm:$0xff] %vm280, %v263
  %283 = vst.msk [vmem:[%s4 + $0x10] sm:$0xff] %vm280, %v266
  %284 = vst.msk [vmem:[%s4 + $0x18] sm:$0xff] %vm280, %v268
  %285 = vst.msk [vmem:[%s4 + $0x20] sm:$0xff] %vm280, %v271
  %286 = vst.msk [vmem:[%s4 + $0x28] sm:$0xff] %vm280, %v273
  %287 = vst.msk [vmem:[%s4 + $0x30] sm:$0xff] %vm280, %v276
  %288 = vst.msk [vmem:[%s4 + $0x38] sm:$0xff] %vm280, %v278
  // Predicated region
  $region18: #{tpu_custom_call.1} parent=0 // pred_check
    _
  $region19: #{tpu_custom_call.1} parent=0 // pred_check_branch
    %290 = sbr.rel (0) target = $region21
  $region20: #{tpu_custom_call.1} parent=0 // pred_region
    _
  $region21: #{tpu_custom_call.1} parent=0 // pred_fallthru
    _
  // Predicated region
  $region22: #{tpu_custom_call.1} parent=0 // pred_check
    _
  $region23: #{tpu_custom_call.1} parent=0 // pred_check_branch
    %292 = sbr.rel (0) target = $region25
  $region24: #{tpu_custom_call.1} parent=0 // pred_region
    _
  $region25: #{tpu_custom_call.1} parent=0 // pred_fallthru
    _

</llo_original>
